<compile_context>
chip_gen: v7x
topology: tpu7x:2x2x1
jax: 0.10.0
libtpu: 0.0.40
codegen_flags: <defaults>
</compile_context>

<pallas_src>
import functools
import math

import jax
import jax.numpy as jnp
from jax.experimental import pallas as pl
from jax.experimental.pallas import tpu as pltpu

_LANE = 128
_MAX_TILE_ROWS = 1024   # f32 block = 512 KiB; well under scoped VMEM on all gens (incl. v7x).
_LOG2 = math.log(2.0)


def _log_cosh_kernel(yp_ref, yt_ref, out_ref, *, n, tile_rows, blocks_per_shard,
                     need_mask):
    """Per-tile log-cosh; accumulates (8,128) partial sums into out_ref."""
    i = pl.program_id(1)

    @pl.when(i == 0)
    def _():
        out_ref[...] = jnp.zeros_like(out_ref)

    d = yp_ref[...].astype(jnp.float32) - yt_ref[...].astype(jnp.float32)
    a = jnp.abs(d)
    val = a + jnp.log1p(jnp.exp(-2.0 * a)) - jnp.float32(_LOG2)

    if need_mask:  # static Python bool: only emitted when the grid over-covers n
        c = pl.program_id(0)
        row0 = (c * blocks_per_shard + i) * tile_rows
        rid = jax.lax.broadcasted_iota(jnp.int32, (tile_rows, _LANE), 0)
        lid = jax.lax.broadcasted_iota(jnp.int32, (tile_rows, _LANE), 1)
        elem = (row0 + rid) * _LANE + lid
        val = jnp.where(elem < n, val, 0.0)

    # Fold sublane groups into a lane-resident (8,128) accumulator: pure VPU adds,
    # no per-step cross-lane (XLU) reduce and no SMEM scalar round-trip.
    out_ref[...] += val.reshape(tile_rows // 8, 8, _LANE).sum(axis=0)


def log_cosh_loss(y_pred: jax.Array, y_true: jax.Array) -> jax.Array:
    assert y_pred.shape == y_true.shape, "shape mismatch"
    n = y_pred.size

    yp = y_pred.reshape(-1)
    yt = y_true.reshape(-1)

    # View as (rows, 128); only pad (cheap, <128 elems) when n is not already
    # lane-aligned.  Partial tiles are masked in-kernel, so no padding to a
    # full tile is needed.
    if n % _LANE != 0:
        pad = _LANE - n % _LANE
        yp = jnp.pad(yp, (0, pad))
        yt = jnp.pad(yt, (0, pad))
    rows = yp.size // _LANE
    yp = yp.reshape(rows, _LANE)
    yt = yt.reshape(rows, _LANE)

    # Sublane quantum depends on packing (>=4B: 8, 2B: 16, 1B: 32 rows).
    min_itemsize = min(yp.dtype.itemsize, yt.dtype.itemsize)
    sub_q = {1: 32, 2: 16}.get(min_itemsize, 8)
    tile_rows = min(_MAX_TILE_ROWS, ((rows + sub_q - 1) // sub_q) * sub_q)

    total_blocks = pl.cdiv(rows, tile_rows)
    num_shards = 2 if total_blocks >= 2 else 1       # megacore split on v7x
    blocks_per_shard = pl.cdiv(total_blocks, num_shards)
    covered = num_shards * blocks_per_shard * tile_rows * _LANE
    need_mask = covered != n

    def in_map(c, i):
        # Clamp so DMAs for over-shoot blocks stay in bounds; their (logically
        # out-of-range) contribution is masked to zero in-kernel.
        return (jnp.minimum(c * blocks_per_shard + i, total_blocks - 1), 0)

    kernel = functools.partial(
        _log_cosh_kernel, n=n, tile_rows=tile_rows,
        blocks_per_shard=blocks_per_shard, need_mask=need_mask)

    partials = pl.pallas_call(
        kernel,
        out_shape=jax.ShapeDtypeStruct((num_shards, 8, _LANE), jnp.float32),
        grid_spec=pltpu.PrefetchScalarGridSpec(
            num_scalar_prefetch=0,
            grid=(num_shards, blocks_per_shard),
            in_specs=[
                pl.BlockSpec((tile_rows, _LANE), in_map),
                pl.BlockSpec((tile_rows, _LANE), in_map),
            ],
            out_specs=pl.BlockSpec((None, 8, _LANE), lambda c, i: (c, 0, 0)),
        ),
        compiler_params=pltpu.CompilerParams(
            dimension_semantics=("parallel", "arbitrary")),
    )(yp, yt)

    # Single final cross-lane reduce + mean, outside the hot loop.
    return jnp.sum(partials) / jnp.float32(n)


class LogCoshLoss:
    """Stateless module mirroring the PyTorch LogCoshLoss."""

    def __call__(self, y_pred: jax.Array, y_true: jax.Array) -> jax.Array:
        return log_cosh_loss(y_pred, y_true)


if __name__ == "__main__":
    def reference(y_pred, y_true):
        d = y_pred.astype(jnp.float32) - y_true.astype(jnp.float32)
        return jnp.mean(d + jax.nn.softplus(-2.0 * d) - math.log(2.0))

    loss_mod = LogCoshLoss()
    key = jax.random.PRNGKey(0)

    # Case 1: NCHW-like f32 tensors (batch=2, channels=4, 16x16).
    k1, k2 = jax.random.split(key)
    yp = jax.random.normal(k1, (2, 4, 16, 16), dtype=jnp.float32)
    yt = jax.random.normal(k2, (2, 4, 16, 16), dtype=jnp.float32)
    out = jax.block_until_ready(loss_mod(yp, yt))
    assert jnp.allclose(out, reference(yp, yt), atol=1e-5, rtol=1e-5), (out, reference(yp, yt))

    # Case 2: ragged size (not lane-aligned) exercises the in-kernel mask path.
    k3, k4 = jax.random.split(k1)
    yp2 = jax.random.normal(k3, (3, 5, 7, 11), dtype=jnp.float32)
    yt2 = jax.random.normal(k4, (3, 5, 7, 11), dtype=jnp.float32)
    out2 = jax.block_until_ready(loss_mod(yp2, yt2))
    assert jnp.allclose(out2, reference(yp2, yt2), atol=1e-5, rtol=1e-5), (out2, reference(yp2, yt2))

    # Case 3: native bf16 inputs streamed without a wrapper up-cast.
    yp3 = yp.astype(jnp.bfloat16)
    yt3 = yt.astype(jnp.bfloat16)
    out3 = jax.block_until_ready(loss_mod(yp3, yt3))
    assert jnp.allclose(out3, reference(yp3, yt3), atol=1e-5, rtol=1e-5), (out3, reference(yp3, yt3))

    print("KERNEL_OK")
</pallas_src>

<mosaic_0001>
module attributes {stable_mosaic.version = 11 : i64} {
  func.func @_log_cosh_kernel(%arg0: i32, %arg1: i32, %arg2: memref<16x128xf32, #tpu.memory_space<vmem>>, %arg3: memref<16x128xf32, #tpu.memory_space<vmem>>, %arg4: memref<1x8x128xf32, #tpu.memory_space<vmem>>) attributes {dimension_semantics = [#tpu.dimension_semantics<parallel>, #tpu.dimension_semantics<arbitrary>], iteration_bounds = array<i64: 1, 1>, scalar_prefetch = 0 : i64, scratch_operands = 0 : i64, tpu.core_type = #tpu.core_type<tc>, window_params = [{transform_indices = @transform_0, window_bounds = array<i64: 16, 128>}, {transform_indices = @transform_1, window_bounds = array<i64: 16, 128>}, {transform_indices = @transform_2, window_bounds = array<i64: 1, 8, 128>}]} {
    %c0_i32 = arith.constant 0 : i32
    %0 = arith.cmpi eq, %arg1, %c0_i32 : i32
    %1 = arith.extui %0 : i1 to i32
    %c0_i32_0 = arith.constant 0 : i32
    %2 = arith.cmpi ne, %1, %c0_i32_0 : i32
    scf.if %2 {
      %cst_12 = arith.constant 0.000000e+00 : f32
      %22 = vector.broadcast %cst_12 : f32 to vector<8x128xf32>
      %c0_13 = arith.constant 0 : index
      %c0_14 = arith.constant 0 : index
      %c0_15 = arith.constant 0 : index
      %23 = vector.load %arg4[%c0_13, %c0_14, %c0_15] : memref<1x8x128xf32, #tpu.memory_space<vmem>>, vector<1x8x128xf32>
      %24 = vector.shape_cast %23 : vector<1x8x128xf32> to vector<8x128xf32>
      %25 = vector.shape_cast %22 : vector<8x128xf32> to vector<1x8x128xf32>
      tpu.vector_store %arg4[%c0_13, %c0_14, %c0_15], %25 {strides = array<i32>} : memref<1x8x128xf32, #tpu.memory_space<vmem>>, vector<1x8x128xf32>,
    } else {
    }
    %c0 = arith.constant 0 : index
    %c0_1 = arith.constant 0 : index
    %3 = vector.load %arg2[%c0, %c0_1] : memref<16x128xf32, #tpu.memory_space<vmem>>, vector<16x128xf32>
    %c0_2 = arith.constant 0 : index
    %c0_3 = arith.constant 0 : index
    %4 = vector.load %arg3[%c0_2, %c0_3] : memref<16x128xf32, #tpu.memory_space<vmem>>, vector<16x128xf32>
    %5 = arith.subf %3, %4 : vector<16x128xf32>
    %6 = math.absf %5 : vector<16x128xf32>
    %cst = arith.constant -2.000000e+00 : f32
    %7 = vector.broadcast %cst : f32 to vector<16x128xf32>
    %8 = arith.mulf %7, %6 : vector<16x128xf32>
    %9 = math.exp %8 : vector<16x128xf32>
    %10 = math.log1p %9 : vector<16x128xf32>
    %11 = arith.addf %6, %10 : vector<16x128xf32>
    %cst_4 = arith.constant 0.693147182 : f32
    %12 = vector.broadcast %cst_4 : f32 to vector<16x128xf32>
    %13 = arith.subf %11, %12 : vector<16x128xf32>
    %c0_5 = arith.constant 0 : index
    %c0_6 = arith.constant 0 : index
    %c0_7 = arith.constant 0 : index
    %14 = vector.load %arg4[%c0_5, %c0_6, %c0_7] : memref<1x8x128xf32, #tpu.memory_space<vmem>>, vector<1x8x128xf32>
    %15 = vector.shape_cast %14 : vector<1x8x128xf32> to vector<8x128xf32>
    %16 = vector.shape_cast %13 : vector<16x128xf32> to vector<2x8x128xf32>
    %cst_8 = arith.constant dense<0.000000e+00> : vector<8x128xf32>
    %17 = vector.multi_reduction <add>, %16, %cst_8 [0] : vector<2x8x128xf32> to vector<8x128xf32>
    %18 = arith.addf %15, %17 : vector<8x128xf32>
    %c0_9 = arith.constant 0 : index
    %c0_10 = arith.constant 0 : index
    %c0_11 = arith.constant 0 : index
    %19 = vector.load %arg4[%c0_9, %c0_10, %c0_11] : memref<1x8x128xf32, #tpu.memory_space<vmem>>, vector<1x8x128xf32>
    %20 = vector.shape_cast %19 : vector<1x8x128xf32> to vector<8x128xf32>
    %21 = vector.shape_cast %18 : vector<8x128xf32> to vector<1x8x128xf32>
    tpu.vector_store %arg4[%c0_9, %c0_10, %c0_11], %21 {strides = array<i32>} : memref<1x8x128xf32, #tpu.memory_space<vmem>>, vector<1x8x128xf32>,
    return
  }
  func.func @transform_0(%arg0: i32, %arg1: i32) -> (i32, i32) {
    %c1_i32 = arith.constant 1 : i32
    %0 = arith.muli %arg0, %c1_i32 : i32
    %1 = arith.addi %0, %arg1 : i32
    %c0_i32 = arith.constant 0 : i32
    %2 = arith.minsi %1, %c0_i32 : i32
    %c0_i32_0 = arith.constant 0 : i32
    %c0_i32_1 = arith.constant 0 : i32
    return %2, %c0_i32_0 : i32, i32
  }
  func.func @transform_1(%arg0: i32, %arg1: i32) -> (i32, i32) {
    %c1_i32 = arith.constant 1 : i32
    %0 = arith.muli %arg0, %c1_i32 : i32
    %1 = arith.addi %0, %arg1 : i32
    %c0_i32 = arith.constant 0 : i32
    %2 = arith.minsi %1, %c0_i32 : i32
    %c0_i32_0 = arith.constant 0 : i32
    %c0_i32_1 = arith.constant 0 : i32
    return %2, %c0_i32_0 : i32, i32
  }
  func.func @transform_2(%arg0: i32, %arg1: i32) -> (i32, i32, i32) {
    %c0_i32 = arith.constant 0 : i32
    %c0_i32_0 = arith.constant 0 : i32
    %c0_i32_1 = arith.constant 0 : i32
    return %arg0, %c0_i32, %c0_i32_0 : i32, i32, i32
  }
}

</mosaic_0001>

<llo_original>
// kernel: tpu_custom_call.1
$region0: #{tpu_custom_call.1}
  #allocation0 [shape = 'u32[]', space=smem, size = 0x4, offset = 0x4, fixed_abs, tag = 'smem constant byte address 0x4 - core index']
  #allocation1 [shape = 'u32[144,128]{1,0:T(1,128)}', space=vmem, size = 0x12000, scoped, tag = 'internal scratch']
  %s0 = inlined_call_operand.hbm [shape: f32[16,128], index: 0, kind: input, shape index: {}]
  %s1 = inlined_call_operand.hbm [shape: f32[16,128], index: 1, kind: input, shape index: {}]
  %s2 = inlined_call_operand.hbm [shape: f32[1,8,128], index: 2, kind: output, shape index: {}]
  %s3 = sld [smem:[#allocation0]]
  $region30: #{tpu_custom_call.1} parent=0
    _
  %s5 = ssub.s32 1, %s3
  %s6 = scalar_select 0, %s5, %s3
  $region1: #{tpu_custom_call.1} parent=0
    #allocation2 [shape = 'u8[8192]{0}', space=vmem, size = 0x2000, scoped, tag = 'input window, operand 0, single buffered']
    #allocation3 [shape = 's32[1]{0}', space=sflag, size = 0x4, scoped, tag = 'scoped memory for tpu_custom_call.1']
    #allocation4 [shape = 's32[1]{0}', space=sflag, size = 0x4, scoped, tag = 'scoped memory for tpu_custom_call.1']
    #allocation5 [shape = 'u8[8192]{0}', space=vmem, size = 0x2000, scoped, tag = 'input window, operand 1, single buffered']
    #allocation6 [shape = 's32[1]{0}', space=sflag, size = 0x4, scoped, tag = 'scoped memory for tpu_custom_call.1']
    #allocation7 [shape = 'u8[4096]{0}', space=vmem, size = 0x1000, scoped, tag = 'output window, operand 0, single buffered']
    %7 = vsyncpa [#allocation3], 0
    %8 = vsyncpa [#allocation6], 0
    %9 = vsyncpa [#allocation4], 0
    // Predicated region
    $region2: #{tpu_custom_call.1} parent=1 // pred_check
      _
    $region3: #{tpu_custom_call.1} parent=1 // pred_check_branch
      %11 = sbr.rel (0) target = $region5
    $region4: #{tpu_custom_call.1} parent=1 // pred_region
      %s12 = sadd.s32 0, 0
      %p13 = scmp.lt.s32.totalorder %s12, 0
      %s14 = scalar_select %p13, %s12, 0
      %s15 = smul.u32 2, %s14
      %s17 = ssub.s32 256, 256
      %18 = vsyncadd [#allocation3], %s17
      %s19 = smul.addr %s15, 128
      %s20 = scalar_lea.hbm %s0, %s19
      %s21 = sshll.u32 [#allocation2], 4
      %s22 = int_to_ptr.vmem [resolvable:$true] %s21
      %27 = dma.hbm_to_vmem [thread:$0]  %s20, 256, %s22, [#allocation3], 128, 128, 8
    $region5: #{tpu_custom_call.1} parent=1 // pred_fallthru
      _
    // Predicated region
    $region6: #{tpu_custom_call.1} parent=1 // pred_check
      _
    $region7: #{tpu_custom_call.1} parent=1 // pred_check_branch
      %29 = sbr.rel (0) target = $region9
    $region8: #{tpu_custom_call.1} parent=1 // pred_region
      %s30 = sadd.s32 0, 0
      %p31 = scmp.lt.s32.totalorder %s30, 0
      %s32 = scalar_select %p31, %s30, 0
      %s33 = smul.u32 2, %s32
      %s35 = ssub.s32 256, 256
      %36 = vsyncadd [#allocation6], %s35
      %s37 = smul.addr %s33, 128
      %s38 = scalar_lea.hbm %s1, %s37
      %s39 = sshll.u32 [#allocation5], 4
      %s40 = int_to_ptr.vmem [resolvable:$true] %s39
      %45 = dma.hbm_to_vmem [thread:$0]  %s38, 256, %s40, [#allocation6], 128, 128, 8
    $region9: #{tpu_custom_call.1} parent=1 // pred_fallthru
      _
    // Predicated region
    $region10: #{tpu_custom_call.1} parent=1 // pred_check
      _
    $region11: #{tpu_custom_call.1} parent=1 // pred_check_branch
      %47 = sbr.rel (0) target = $region13
    $region12: #{tpu_custom_call.1} parent=1 // pred_region
      %48 = dma.done [#allocation3], 256
    $region13: #{tpu_custom_call.1} parent=1 // pred_fallthru
      _
    // Predicated region
    $region14: #{tpu_custom_call.1} parent=1 // pred_check
      _
    $region15: #{tpu_custom_call.1} parent=1 // pred_check_branch
      %50 = sbr.rel (0) target = $region17
    $region16: #{tpu_custom_call.1} parent=1 // pred_region
      %51 = dma.done [#allocation6], 256
    $region17: #{tpu_custom_call.1} parent=1 // pred_fallthru
      _
    %s52 = sadd.s32 0, 0
    %p53 = scmp.lt.s32.totalorder %s52, 0
    %s54 = scalar_select %p53, %s52, 0
    %s55 = smul.u32 2, %s54
    %s56 = sadd.s32 0, 0
    %p57 = scmp.lt.s32.totalorder %s56, 0
    %s58 = scalar_select %p57, %s56, 0
    %s59 = smul.u32 2, %s58
    %p60 = scmp.eq.s32.totalorder 0, 0
    // Predicated region
    $region18: #{tpu_custom_call.1} parent=1 // pred_check
      %p61 = pneg %p60
    $region19: #{tpu_custom_call.1} parent=1 // pred_check_branch
      %63 = sbr.rel (%p61) target = $region21
    $region20: #{tpu_custom_call.1} parent=1 // pred_region
      %64 = vst [vmem:[#allocation7] sm:$0xff] 0.0
    $region21: #{tpu_custom_call.1} parent=1 // pred_fallthru
      _
    %v65 = vld [vmem:[#allocation2] sm:$0xff]
    %v66 = vld [vmem:[#allocation2 + $0x8] sm:$0xff]
    %v67 = vld [vmem:[#allocation5] sm:$0xff]
    %v68 = vld [vmem:[#allocation5 + $0x8] sm:$0xff]
    %v69 = vsub.f32 %v65, %v67
    %v70 = vsub.f32 %v66, %v68
    %v71 = vand.u32 2147483647, %v69
    %v72 = vand.u32 2147483647, %v70
    %v73 = vmul.f32 %v71, -2.0
    %v74 = vmul.f32 %v72, -2.0
    %v75 = vmul.f32 %v73, 1.442695
    %v76 = vpow.pop %v75
    %v77 = vmul.f32 %v74, 1.442695
    %v78 = vpow.pop %v77
    %v79 = vadd.f32 %v76, 1.0
    %v80 = vlog2.pop %v79
    %v81 = vmul.f32 %v80, 0.6931472
    %v82 = vmul.f32 -0.5, %v76
    %v83 = vadd.f32 %v82, 1.0
    %v84 = vmul.f32 %v83, %v76
    %v85 = vand.u32 2147483647, %v76
    %vm86 = vcmp.lt.f32.partialorder %v85, 0.0004427343
    %v87 = vsel %vm86, %v84, %v81
    %v88 = vadd.f32 %v78, 1.0
    %v89 = vlog2.pop %v88
    %v90 = vmul.f32 %v89, 0.6931472
    %v91 = vmul.f32 -0.5, %v78
    %v92 = vadd.f32 %v91, 1.0
    %v93 = vmul.f32 %v92, %v78
    %v94 = vand.u32 2147483647, %v78
    %vm95 = vcmp.lt.f32.partialorder %v94, 0.0004427343
    %v96 = vsel %vm95, %v93, %v90
    %v97 = vadd.f32 %v71, %v87
    %v98 = vadd.f32 %v72, %v96
    %v99 = vsub.f32 %v97, 0.6931472
    %v100 = vsub.f32 %v98, 0.6931472
    %v101 = vld [vmem:[#allocation7] sm:$0xff]
    %v102 = vadd.f32 %v99, %v100
    %v103 = vadd.f32 %v101, %v102
    %104 = vst [vmem:[#allocation7] sm:$0xff] %v103
    // Predicated region
    $region22: #{tpu_custom_call.1} parent=1 // pred_check
      _
    $region23: #{tpu_custom_call.1} parent=1 // pred_check_branch
      %106 = sbr.rel (0) target = $region25
    $region24: #{tpu_custom_call.1} parent=1 // pred_region
      %s108 = ssub.s32 128, 128
      %109 = vsyncadd [#allocation4], %s108
      %s111 = sshll.u32 [#allocation7], 4
      %s112 = int_to_ptr.vmem [resolvable:$true] %s111
      %114 = dma.vmem_to_hbm [thread:$0]  %s112, 128, %s2, [#allocation4]
    $region25: #{tpu_custom_call.1} parent=1 // pred_fallthru
      _
    // Predicated region
    $region26: #{tpu_custom_call.1} parent=1 // pred_check
      _
    $region27: #{tpu_custom_call.1} parent=1 // pred_check_branch
      %116 = sbr.rel (0) target = $region29
    $region28: #{tpu_custom_call.1} parent=1 // pred_region
      %117 = dma.done [#allocation4], 128
    $region29: #{tpu_custom_call.1} parent=1 // pred_fallthru
      _
    %118 = vsyncpa [#allocation3], 1
    %119 = vsyncpa [#allocation6], 1
    %120 = vsyncpa [#allocation4], 1

</llo_original>
